<compile_context>
chip_gen: v5e
topology: v5e:2x2
jax: 0.10.0
libtpu: 0.0.40
codegen_flags: <defaults>
</compile_context>

<pallas_src>
import functools

import jax
import jax.numpy as jnp
from jax import lax
from jax.experimental import pallas as pl
from jax.experimental.pallas import tpu as pltpu


# --------------------------------------------------------------------------
# Kernels
# --------------------------------------------------------------------------
def _finish_mask(rep, rel, vmax, rel_thr, rep_thr):
    """Horizontal 3-tap max (2 lane rolls + edge masks) + thresholding."""
    neg_inf = jnp.float32(-jnp.inf)
    W = vmax.shape[-1]
    col_ids = lax.broadcasted_iota(jnp.int32, (1, W), 1)
    left = jnp.where(col_ids == 0, neg_inf, pltpu.roll(vmax, shift=1, axis=1))
    right = jnp.where(col_ids == W - 1, neg_inf, pltpu.roll(vmax, shift=W - 1, axis=1))
    m = jnp.maximum(vmax, jnp.maximum(left, right))
    maxima = (rep == m) & (rep >= rep_thr) & (rel >= rel_thr)
    return maxima.astype(jnp.int8)


def _nms_kernel_flat(rel_ref, rep_ref, out_ref, *, img_h, rel_thr, rep_thr):
    """Small-map path: block = TB whole (padded) images stacked along rows."""
    neg_inf = jnp.float32(-jnp.inf)
    rep = rep_ref[...]                          # (TB*Hp, Wp) f32
    rel = rel_ref[...]
    T, _ = rep.shape

    row_ids = lax.broadcasted_iota(jnp.int32, (T, 1), 0)
    in_row = row_ids % img_h                    # row index within each image

    # Vertical 3-tap max; image boundaries (and the roll wraparound, which also
    # falls on an image boundary) masked to -inf.
    down = jnp.where(in_row == 0, neg_inf, pltpu.roll(rep, shift=1, axis=0))
    up = jnp.where(in_row == img_h - 1, neg_inf, pltpu.roll(rep, shift=T - 1, axis=0))
    vmax = jnp.maximum(rep, jnp.maximum(up, down))

    out_ref[...] = _finish_mask(rep, rel, vmax, rel_thr, rep_thr)


def _nms_kernel_tiled(rel_ref, rep_ref, top_ref, bot_ref, out_ref, *, rel_thr, rep_thr):
    """Large-map path: one (TH, Wp) tile of one image, 1-row halos from neighbours."""
    i = pl.program_id(1)                        # H-tile index
    num_h = pl.num_programs(1)
    neg_inf = jnp.float32(-jnp.inf)

    rep = rep_ref[...]                          # (TH, Wp) f32
    rel = rel_ref[...]
    TH, _ = rep.shape

    # Rows just above / below this tile (last/first row of the 8-row halo
    # blocks); -inf at the global image border.
    above = jnp.where(i > 0, top_ref[7:8, :], neg_inf)           # (1, Wp)
    below = jnp.where(i < num_h - 1, bot_ref[0:1, :], neg_inf)   # (1, Wp)

    row_ids = lax.broadcasted_iota(jnp.int32, (TH, 1), 0)
    down = jnp.where(row_ids == 0, above, pltpu.roll(rep, shift=1, axis=0))
    up = jnp.where(row_ids == TH - 1, below, pltpu.roll(rep, shift=TH - 1, axis=0))
    vmax = jnp.maximum(rep, jnp.maximum(up, down))

    out_ref[...] = _finish_mask(rep, rel, vmax, rel_thr, rep_thr)


# --------------------------------------------------------------------------
# Wrapper
# --------------------------------------------------------------------------
def _round_up(x, m):
    return (x + m - 1) // m * m


def _pad3(x, Hp, Wp, value):
    _, H, W = x.shape
    if Hp == H and Wp == W:
        return x
    return jnp.pad(x, ((0, 0), (0, Hp - H), (0, Wp - W)), constant_values=value)


def nms_mask(reliability, repeatability, rel_thr=0.7, rep_thr=0.7,
             target_bytes=4 * 1024 * 1024):
    """(B, C, H, W) scores -> int8 (B, C, H, W) maxima mask (Pallas TPU)."""
    assert reliability.shape == repeatability.shape
    B, C, H, W = repeatability.shape
    BC = B * C
    rel = reliability.astype(jnp.float32).reshape(BC, H, W)
    rep = repeatability.astype(jnp.float32).reshape(BC, H, W)

    Wp = _round_up(W, 128)               # lane-dense loads + unmasked int8 stores
    Hp8 = _round_up(H, 8)
    per_image_bytes = Hp8 * Wp * 4
    neg_inf = float(-jnp.inf)
    vmem_limit = 48 * 1024 * 1024
    kern_args = dict(rel_thr=float(rel_thr), rep_thr=float(rep_thr))

    if per_image_bytes <= target_bytes:
        # ---------- small-map path: batch whole images per grid step ----------
        Hp = Hp8
        rep_f = _pad3(rep, Hp, Wp, neg_inf).reshape(BC * Hp, Wp)
        rel_f = _pad3(rel, Hp, Wp, neg_inf).reshape(BC * Hp, Wp)

        TB = 1                            # images per grid step
        for d in sorted((d for d in range(1, BC + 1) if BC % d == 0), reverse=True):
            if d * per_image_bytes <= target_bytes and (BC // d >= 2 or BC == 1):
                TB = d
                break
        T = TB * Hp
        spec = pl.BlockSpec((T, Wp), lambda b: (b, 0))

        mask_f = pl.pallas_call(
            functools.partial(_nms_kernel_flat, img_h=Hp, **kern_args),
            out_shape=jax.ShapeDtypeStruct((BC * Hp, Wp), jnp.int8),
            grid=(BC // TB,),
            in_specs=[spec, spec],
            out_specs=spec,
            compiler_params=pltpu.CompilerParams(
                dimension_semantics=("parallel",),
                vmem_limit_bytes=vmem_limit,
            ),
        )(rel_f, rep_f)
        mask3 = mask_f.reshape(BC, Hp, Wp)
    else:
        # ---------- large-map path: tile H, halos from neighbouring tiles ----------
        max_rows = max(8, target_bytes // (Wp * 4))
        TH = min(_round_up(H, 32), (max_rows // 32) * 32)
        if TH < 32:                       # extremely wide maps
            TH = max(8, (max_rows // 8) * 8)
        TH = min(TH, _round_up(H, 8))
        Hp = _round_up(H, TH)
        num_h = Hp // TH
        th8 = TH // 8
        nblk8 = Hp // 8

        rep_p = _pad3(rep, Hp, Wp, neg_inf)
        rel_p = _pad3(rel, Hp, Wp, neg_inf)

        main_spec = pl.BlockSpec((pl.Squeezed(), TH, Wp), lambda bc, i: (bc, i, 0))
        # 8-row halo blocks whose last / first row is the row just above / below
        # the current tile (clamped at borders; masked to -inf in-kernel).
        top_spec = pl.BlockSpec(
            (pl.Squeezed(), 8, Wp),
            lambda bc, i: (bc, jnp.maximum(i * th8 - 1, 0), 0))
        bot_spec = pl.BlockSpec(
            (pl.Squeezed(), 8, Wp),
            lambda bc, i: (bc, jnp.minimum((i + 1) * th8, nblk8 - 1), 0))

        mask3 = pl.pallas_call(
            functools.partial(_nms_kernel_tiled, **kern_args),
            out_shape=jax.ShapeDtypeStruct((BC, Hp, Wp), jnp.int8),
            grid=(BC, num_h),
            in_specs=[main_spec, main_spec, top_spec, bot_spec],
            out_specs=main_spec,
            compiler_params=pltpu.CompilerParams(
                dimension_semantics=("parallel", "parallel"),
                vmem_limit_bytes=vmem_limit,
            ),
        )(rel_p, rep_p, rep_p, rep_p)

    return mask3[:, :H, :W].reshape(B, C, H, W)


def non_max_suppression(reliability, repeatability, rel_thr=0.7, rep_thr=0.7):
    """Faithful port of NonMaxSuppression.forward.

    `reliability` / `repeatability` are length-1 lists of (B, C, H, W) arrays.
    Returns a (2, N) int array: the (H, W) coordinates of surviving maxima
    (== maxima.nonzero().t()[2:4] in the PyTorch module).
    """
    assert len(reliability) == len(repeatability) == 1
    rel, rep = reliability[0], repeatability[0]
    mask = nms_mask(rel, rep, rel_thr, rep_thr)
    # TODO(synk): dynamic-size nonzero (data-dependent output shape) has no
    # Pallas equivalent; it stays outside the kernel, matching torch.nonzero.
    idx = jnp.nonzero(mask)
    return jnp.stack(idx)[2:4]


# --------------------------------------------------------------------------
# Validation
# --------------------------------------------------------------------------
def _reference_mask(rel, rep, rel_thr=0.7, rep_thr=0.7):
    """Pure-JAX reference of the hot path (MaxPool2d(3,1,1) semantics)."""
    mp = lax.reduce_window(
        rep, -jnp.inf, lax.max,
        window_dimensions=(1, 1, 3, 3),
        window_strides=(1, 1, 1, 1),
        padding=((0, 0), (0, 0), (1, 1), (1, 1)))
    return (rep == mp) & (rep >= rep_thr) & (rel >= rel_thr)


if __name__ == "__main__":
    key = jax.random.PRNGKey(0)
    ks = jax.random.split(key, 6)

    # 1) R2D2-style small score maps -> batched small-map path (grid >= 2).
    B, C, H, W = 2, 4, 16, 16
    rel = jax.random.uniform(ks[0], (B, C, H, W), dtype=jnp.float32)
    rep = jax.random.uniform(ks[1], (B, C, H, W), dtype=jnp.float32)

    coords = jax.block_until_ready(non_max_suppression([rel], [rep]))
    assert coords.shape[0] == 2

    mask = jax.block_until_ready(nms_mask(rel, rep))
    assert jnp.array_equal(mask.astype(bool), _reference_mask(rel, rep)), \
        "Pallas NMS mask mismatch (2x4x16x16)"

    # 2) Odd shapes (H < 8, W not a multiple of 128) -> exercises the padding path.
    rel2 = jax.random.uniform(ks[2], (1, 3, 5, 7), dtype=jnp.float32)
    rep2 = jax.random.uniform(ks[3], (1, 3, 5, 7), dtype=jnp.float32)
    mask2 = jax.block_until_ready(nms_mask(rel2, rep2))
    assert jnp.array_equal(mask2.astype(bool), _reference_mask(rel2, rep2)), \
        "Pallas NMS mask mismatch (1x3x5x7)"

    # 3) Force the tiled-H halo path (small VMEM target) with H/W padding.
    rel3 = jax.random.uniform(ks[4], (1, 2, 44, 200), dtype=jnp.float32)
    rep3 = jax.random.uniform(ks[5], (1, 2, 44, 200), dtype=jnp.float32)
    mask3 = jax.block_until_ready(nms_mask(rel3, rep3, target_bytes=16 * 1024))
    assert jnp.array_equal(mask3.astype(bool), _reference_mask(rel3, rep3)), \
        "Pallas NMS mask mismatch (1x2x44x200, tiled)"

    print("KERNEL_OK")
</pallas_src>

<mosaic_0001>
module attributes {stable_mosaic.version = 11 : i64} {
  func.func @_nms_kernel_flat(%arg0: i32, %arg1: memref<64x128xf32, #tpu.memory_space<vmem>>, %arg2: memref<64x128xf32, #tpu.memory_space<vmem>>, %arg3: memref<64x128xi8, #tpu.memory_space<vmem>>) attributes {dimension_semantics = [#tpu.dimension_semantics<parallel>], iteration_bounds = array<i64: 2>, scalar_prefetch = 0 : i64, scratch_operands = 0 : i64, tpu.core_type = #tpu.core_type<tc>, window_params = [{transform_indices = @transform_0, window_bounds = array<i64: 64, 128>}, {transform_indices = @transform_1, window_bounds = array<i64: 64, 128>}, {transform_indices = @transform_2, window_bounds = array<i64: 64, 128>}]} {
    %c0 = arith.constant 0 : index
    %c0_0 = arith.constant 0 : index
    %0 = vector.load %arg2[%c0, %c0_0] : memref<64x128xf32, #tpu.memory_space<vmem>>, vector<64x128xf32>
    %c0_1 = arith.constant 0 : index
    %c0_2 = arith.constant 0 : index
    %1 = vector.load %arg1[%c0_1, %c0_2] : memref<64x128xf32, #tpu.memory_space<vmem>>, vector<64x128xf32>
    %2 = tpu.iota {dimensions = array<i32: 0>} : vector<64x1xi32>
    %c16_i32 = arith.constant 16 : i32
    %c0_i32 = arith.constant 0 : i32
    %3 = arith.cmpi eq, %c16_i32, %c0_i32 : i32
    %c1_i32 = arith.constant 1 : i32
    %4 = arith.select %3, %c1_i32, %c16_i32 : i32
    %5 = vector.broadcast %4 : i32 to vector<64x1xi32>
    %6 = arith.remsi %2, %5 : vector<64x1xi32>
    %c0_i32_3 = arith.constant 0 : i32
    %7 = vector.broadcast %c0_i32_3 : i32 to vector<64x1xi32>
    %8 = arith.cmpi ne, %6, %7 : vector<64x1xi32>
    %c0_i32_4 = arith.constant 0 : i32
    %9 = vector.broadcast %c0_i32_4 : i32 to vector<64x1xi32>
    %10 = arith.cmpi slt, %6, %9 : vector<64x1xi32>
    %c0_i32_5 = arith.constant 0 : i32
    %11 = arith.cmpi slt, %4, %c0_i32_5 : i32
    %12 = vector.broadcast %11 : i1 to vector<64x1xi1>
    %13 = vector.broadcast %12 : vector<64x1xi1> to vector<64x1xi1>
    %14 = arith.xori %10, %13 : vector<64x1xi1>
    %15 = arith.andi %14, %8 : vector<64x1xi1>
    %16 = vector.broadcast %4 : i32 to vector<64x1xi32>
    %17 = arith.addi %6, %16 : vector<64x1xi32>
    %18 = arith.select %15, %17, %6 : vector<64x1xi1>, vector<64x1xi32>
    %c0_i32_6 = arith.constant 0 : i32
    %19 = vector.broadcast %c0_i32_6 : i32 to vector<64x1xi32>
    %20 = arith.cmpi eq, %18, %19 : vector<64x1xi32>
    %c1_i32_7 = arith.constant 1 : i32
    %21 = tpu.dynamic_rotate %0 by %c1_i32_7 dim 0 : vector<64x128xf32>, i32 -> vector<64x128xf32>
    %cst = arith.constant 0xFF800000 : f32
    %22 = vector.shape_cast %20 : vector<64x1xi1> to vector<64x1xi1>
    %23 = vector.broadcast %22 : vector<64x1xi1> to vector<64x128xi1>
    %24 = vector.broadcast %cst : f32 to vector<64x128xf32>
    %25 = arith.select %23, %24, %21 : vector<64x128xi1>, vector<64x128xf32>
    %c15_i32 = arith.constant 15 : i32
    %26 = vector.broadcast %c15_i32 : i32 to vector<64x1xi32>
    %27 = arith.cmpi eq, %18, %26 : vector<64x1xi32>
    %c63_i32 = arith.constant 63 : i32
    %28 = tpu.dynamic_rotate %0 by %c63_i32 dim 0 : vector<64x128xf32>, i32 -> vector<64x128xf32>
    %cst_8 = arith.constant 0xFF800000 : f32
    %29 = vector.shape_cast %27 : vector<64x1xi1> to vector<64x1xi1>
    %30 = vector.broadcast %29 : vector<64x1xi1> to vector<64x128xi1>
    %31 = vector.broadcast %cst_8 : f32 to vector<64x128xf32>
    %32 = arith.select %30, %31, %28 : vector<64x128xi1>, vector<64x128xf32>
    %33 = arith.maximumf %32, %25 : vector<64x128xf32>
    %34 = arith.maximumf %0, %33 : vector<64x128xf32>
    %35 = tpu.iota {dimensions = array<i32: 1>} : vector<1x128xi32>
    %c0_i32_9 = arith.constant 0 : i32
    %36 = vector.broadcast %c0_i32_9 : i32 to vector<1x128xi32>
    %37 = arith.cmpi eq, %35, %36 : vector<1x128xi32>
    %c1_i32_10 = arith.constant 1 : i32
    %38 = tpu.dynamic_rotate %34 by %c1_i32_10 dim 1 : vector<64x128xf32>, i32 -> vector<64x128xf32>
    %cst_11 = arith.constant 0xFF800000 : f32
    %39 = vector.shape_cast %37 : vector<1x128xi1> to vector<1x128xi1>
    %40 = vector.broadcast %39 : vector<1x128xi1> to vector<64x128xi1>
    %41 = vector.broadcast %cst_11 : f32 to vector<64x128xf32>
    %42 = arith.select %40, %41, %38 : vector<64x128xi1>, vector<64x128xf32>
    %c127_i32 = arith.constant 127 : i32
    %43 = vector.broadcast %c127_i32 : i32 to vector<1x128xi32>
    %44 = arith.cmpi eq, %35, %43 : vector<1x128xi32>
    %c127_i32_12 = arith.constant 127 : i32
    %45 = tpu.dynamic_rotate %34 by %c127_i32_12 dim 1 : vector<64x128xf32>, i32 -> vector<64x128xf32>
    %cst_13 = arith.constant 0xFF800000 : f32
    %46 = vector.shape_cast %44 : vector<1x128xi1> to vector<1x128xi1>
    %47 = vector.broadcast %46 : vector<1x128xi1> to vector<64x128xi1>
    %48 = vector.broadcast %cst_13 : f32 to vector<64x128xf32>
    %49 = arith.select %47, %48, %45 : vector<64x128xi1>, vector<64x128xf32>
    %50 = arith.maximumf %42, %49 : vector<64x128xf32>
    %51 = arith.maximumf %34, %50 : vector<64x128xf32>
    %52 = arith.cmpf oeq, %0, %51 : vector<64x128xf32>
    %cst_14 = arith.constant 0.699999988 : f32
    %53 = vector.broadcast %cst_14 : f32 to vector<64x128xf32>
    %54 = arith.cmpf oge, %0, %53 : vector<64x128xf32>
    %55 = arith.andi %52, %54 : vector<64x128xi1>
    %cst_15 = arith.constant 0.699999988 : f32
    %56 = vector.broadcast %cst_15 : f32 to vector<64x128xf32>
    %57 = arith.cmpf oge, %1, %56 : vector<64x128xf32>
    %58 = arith.andi %55, %57 : vector<64x128xi1>
    %59 = arith.extui %58 : vector<64x128xi1> to vector<64x128xi8>
    %c0_16 = arith.constant 0 : index
    %c0_17 = arith.constant 0 : index
    %60 = vector.load %arg3[%c0_16, %c0_17] : memref<64x128xi8, #tpu.memory_space<vmem>>, vector<64x128xi8>
    tpu.vector_store %arg3[%c0_16, %c0_17], %59 {strides = array<i32>} : memref<64x128xi8, #tpu.memory_space<vmem>>, vector<64x128xi8>,
    return
  }
  func.func @transform_0(%arg0: i32) -> (i32, i32) {
    %c0_i32 = arith.constant 0 : i32
    %c0_i32_0 = arith.constant 0 : i32
    return %arg0, %c0_i32 : i32, i32
  }
  func.func @transform_1(%arg0: i32) -> (i32, i32) {
    %c0_i32 = arith.constant 0 : i32
    %c0_i32_0 = arith.constant 0 : i32
    return %arg0, %c0_i32 : i32, i32
  }
  func.func @transform_2(%arg0: i32) -> (i32, i32) {
    %c0_i32 = arith.constant 0 : i32
    %c0_i32_0 = arith.constant 0 : i32
    return %arg0, %c0_i32 : i32, i32
  }
}

</mosaic_0001>

<llo_original>
// kernel: tpu_custom_call.1
$region0: #{tpu_custom_call.1}
  #allocation0 [shape = 'u32[]', space=smem, size = 0x4, offset = 0x4, fixed_abs, tag = 'smem constant byte address 0x4 - core index']
  #allocation1 [shape = 'u32[72,128]{1,0:T(1,128)}', space=vmem, size = 0x9000, scoped, tag = 'internal scratch']
  %s0 = inlined_call_operand.hbm [shape: f32[128,128], index: 0, kind: input, shape index: {}]
  %s1 = inlined_call_operand.hbm [shape: f32[128,128], index: 1, kind: input, shape index: {}]
  %s2 = inlined_call_operand.hbm [shape: s8[128,128], index: 2, kind: output, shape index: {}]
  %s3 = sld [smem:[#allocation0]]
  $region49: #{tpu_custom_call.1} parent=0
    _
  %s5 = ssub.s32 1, %s3
  %s6 = scalar_select 0, %s5, %s3
  $region1: #{tpu_custom_call.1} parent=0
    #allocation2 [shape = 'u8[65536]{0}', space=vmem, size = 0x10000, scoped, tag = 'input window, operand 0']
    #allocation3 [shape = 's32[2]{0}', space=sflag, size = 0x8, scoped, tag = 'scoped memory for tpu_custom_call.1']
    #allocation4 [shape = 's32[2]{0}', space=sflag, size = 0x8, scoped, tag = 'scoped memory for tpu_custom_call.1']
    #allocation5 [shape = 'u8[65536]{0}', space=vmem, size = 0x10000, scoped, tag = 'input window, operand 1']
    #allocation6 [shape = 's32[2]{0}', space=sflag, size = 0x8, scoped, tag = 'scoped memory for tpu_custom_call.1']
    #allocation7 [shape = 'u8[16384]{0}', space=vmem, size = 0x4000, scoped, tag = 'output window, operand 0']
    %7 = vsyncpa [#allocation3], 0
    %s8 = scalar_lea.sflag [#allocation3], 1
    %9 = vsyncpa %s8, 0
    %10 = vsyncpa [#allocation6], 0
    %s11 = scalar_lea.sflag [#allocation6], 1
    %12 = vsyncpa %s11, 0
    %13 = vsyncpa [#allocation4], 0
    %s14 = scalar_lea.sflag [#allocation4], 1
    %15 = vsyncpa %s14, 0
    loop: start=0, step=1, limit=4
    $region2: #{tpu_custom_call.1} parent=1 // loop_pre_header
      _
    $region3: #{tpu_custom_call.1} parent=1 // loop_header
      %s17 = sphi 0, %s21
      %p18 = scmp.ge.s32.totalorder %s17, 4
      %s27 = sphi 0, %s29
      %s30 = sphi 0, %s27
      %s31 = sphi 0, %s30
      %s47 = sphi 0, %s31
      %s53 = sphi 0, %s55
      %s56 = sphi 0, %s53
      %s57 = sphi 0, %s56
      %s73 = sphi 0, %s57
      %s79 = sphi 0, %s81
      %s82 = sphi 0, %s79
      %s83 = sphi 0, %s82
      %s99 = sphi 0, %s83
    $region4: #{tpu_custom_call.1} parent=1 // loop_header_branch
      %20 = sbr.rel (%p18) target = $region8
    $region5: #{tpu_custom_call.1} parent=1 // loop_body
      %s22 = ssub.s32 %s17, 1
      %s23 = ssub.s32 %s17, 2
      %s24 = sadd.s32 %s17, 1
      %s25 = ssub.s32 %s17, %s24
      %p26 = scmp.eq.s32.totalorder %s25, 0
      %s28 = sadd.s32 %s27, 1
      %s29 = scalar_select %p26, %s27, %s28
      %p32 = pneg %p26
      %p33 = scmp.eq.s32.totalorder %s17, 1
      %p34 = por %p32, %p33
      %p35 = scmp.ne.s32.totalorder %s27, %s30
      %p36 = scmp.eq.s32.totalorder %s17, 0
      %p37 = por %p35, %p36
      %p38 = scmp.ne.s32.totalorder %s27, %s30
      %p39 = scmp.eq.s32.totalorder %s22, 1
      %p40 = por %p38, %p39
      %p41 = scmp.ne.s32.totalorder %s30, %s31
      %p42 = scmp.eq.s32.totalorder %s22, 0
      %p43 = por %p41, %p42
      %p44 = scmp.ne.s32.totalorder %s30, %s31
      %p45 = scmp.eq.s32.totalorder %s23, 1
      %p46 = por %p44, %p45
      %p48 = scmp.ne.s32.totalorder %s31, %s47
      %p49 = scmp.eq.s32.totalorder %s23, 0
      %p50 = por %p48, %p49
      %s51 = ssub.s32 %s17, %s24
      %p52 = scmp.eq.s32.totalorder %s51, 0
      %s54 = sadd.s32 %s53, 1
      %s55 = scalar_select %p52, %s53, %s54
      %p58 = pneg %p52
      %p59 = scmp.eq.s32.totalorder %s17, 1
      %p60 = por %p58, %p59
      %p61 = scmp.ne.s32.totalorder %s53, %s56
      %p62 = scmp.eq.s32.totalorder %s17, 0
      %p63 = por %p61, %p62
      %p64 = scmp.ne.s32.totalorder %s53, %s56
      %p65 = scmp.eq.s32.totalorder %s22, 1
      %p66 = por %p64, %p65
      %p67 = scmp.ne.s32.totalorder %s56, %s57
      %p68 = scmp.eq.s32.totalorder %s22, 0
      %p69 = por %p67, %p68
      %p70 = scmp.ne.s32.totalorder %s56, %s57
      %p71 = scmp.eq.s32.totalorder %s23, 1
      %p72 = por %p70, %p71
      %p74 = scmp.ne.s32.totalorder %s57, %s73
      %p75 = scmp.eq.s32.totalorder %s23, 0
      %p76 = por %p74, %p75
      %s77 = ssub.s32 %s17, %s24
      %p78 = scmp.eq.s32.totalorder %s77, 0
      %s80 = sadd.s32 %s79, 1
      %s81 = scalar_select %p78, %s79, %s80
      %p84 = pneg %p78
      %p85 = scmp.eq.s32.totalorder %s17, 1
      %p86 = por %p84, %p85
      %p87 = scmp.ne.s32.totalorder %s79, %s82
      %p88 = scmp.eq.s32.totalorder %s17, 0
      %p89 = por %p87, %p88
      %p90 = scmp.ne.s32.totalorder %s79, %s82
      %p91 = scmp.eq.s32.totalorder %s22, 1
      %p92 = por %p90, %p91
      %p93 = scmp.ne.s32.totalorder %s82, %s83
      %p94 = scmp.eq.s32.totalorder %s22, 0
      %p95 = por %p93, %p94
      %p96 = scmp.ne.s32.totalorder %s82, %s83
      %p97 = scmp.eq.s32.totalorder %s23, 1
      %p98 = por %p96, %p97
      %p100 = scmp.ne.s32.totalorder %s83, %s99
      %p101 = scmp.eq.s32.totalorder %s23, 0
      %p102 = por %p100, %p101
      %p103 = scmp.le.s32.totalorder 1, %s17
      %p104 = scmp.lt.s32.totalorder %s17, 3
      %p105 = pnand %p103, %p104
      %p106 = pneg %p105
      // Predicated region
      $region9: #{tpu_custom_call.1} parent=5 // pred_check
        _
      $region10: #{tpu_custom_call.1} parent=5 // pred_check_branch
        %108 = sbr.rel (%p105) target = $region12
      $region11: #{tpu_custom_call.1} parent=5 // pred_region
        %s109 = ssub.s32 %s17, 1
      $region12: #{tpu_custom_call.1} parent=5 // pred_fallthru
        _
      %p110 = scmp.lt.s32.totalorder %s17, 2
      // Predicated region
      $region13: #{tpu_custom_call.1} parent=5 // pred_check
        %p111 = pneg %p110
      $region14: #{tpu_custom_call.1} parent=5 // pred_check_branch
        %113 = sbr.rel (%p111) target = $region16
      $region15: #{tpu_custom_call.1} parent=5 // pred_region
        // Predicated region
        $region17: #{tpu_custom_call.1} parent=15 // pred_check
          %p114 = pneg %p37
        $region18: #{tpu_custom_call.1} parent=15 // pred_check_branch
          %116 = sbr.rel (%p114) target = $region20
        $region19: #{tpu_custom_call.1} parent=15 // pred_region
          %s117 = sand.u32 %s27, 1
          %s118 = scalar_lea.sflag [#allocation3], %s117
          %s119 = sand.u32 %s27, 1
          %s120 = smul.addr %s119, 64
          %s121 = scalar_lea.vmem [#allocation2], %s120
          %s122 = smul.u32 8, %s17
          %124 = vsyncadd %s118, 0
          %s125 = smul.addr %s122, 8
          %s126 = scalar_lea.hbm %s0, %s125
          %s127 = sshll.u32 %s126, 4
          %s128 = int_to_ptr.hbm [resolvable:$true] %s127
          %s129 = sshll.u32 %s121, 4
          %s130 = int_to_ptr.vmem [resolvable:$true] %s129
          %135 = dma.hbm_to_vmem [thread:$0]  %s128, 1024, %s130, %s118, 128, 128, 8
        $region20: #{tpu_custom_call.1} parent=15 // pred_fallthru
          _
        // Predicated region
        $region21: #{tpu_custom_call.1} parent=15 // pred_check
          %p136 = pneg %p63
        $region22: #{tpu_custom_call.1} parent=15 // pred_check_branch
          %138 = sbr.rel (%p136) target = $region24
        $region23: #{tpu_custom_call.1} parent=15 // pred_region
          %s139 = sand.u32 %s53, 1
          %s140 = scalar_lea.sflag [#allocation6], %s139
          %s141 = sand.u32 %s53, 1
          %s142 = smul.addr %s141, 64
          %s143 = scalar_lea.vmem [#allocation5], %s142
          %s144 = smul.u32 8, %s17
          %146 = vsyncadd %s140, 0
          %s147 = smul.addr %s144, 8
          %s148 = scalar_lea.hbm %s1, %s147
          %s149 = sshll.u32 %s148, 4
          %s150 = int_to_ptr.hbm [resolvable:$true] %s149
          %s151 = sshll.u32 %s143, 4
          %s152 = int_to_ptr.vmem [resolvable:$true] %s151
          %157 = dma.hbm_to_vmem [thread:$0]  %s150, 1024, %s152, %s140, 128, 128, 8
        $region24: #{tpu_custom_call.1} parent=15 // pred_fallthru
          _
      $region16: #{tpu_custom_call.1} parent=5 // pred_fallthru
        _
      %p158 = scmp.le.s32.totalorder 1, %s17
      %p159 = scmp.lt.s32.totalorder %s17, 3
      %p160 = pnand %p158, %p159
      %p161 = pneg %p160
      // Predicated region
      $region25: #{tpu_custom_call.1} parent=5 // pred_check
        _
      $region26: #{tpu_custom_call.1} parent=5 // pred_check_branch
        %163 = sbr.rel (%p160) target = $region28
      $region27: #{tpu_custom_call.1} parent=5 // pred_region
        %s164 = ssub.s32 %s17, 1
        %s165 = sand.u32 %s30, 1
        %s166 = scalar_lea.sflag [#allocation3], %s165
        %s167 = sand.u32 %s30, 1
        %s168 = smul.addr %s167, 64
        %s169 = scalar_lea.vmem [#allocation2], %s168
        // Predicated region
        $region29: #{tpu_custom_call.1} parent=27 // pred_check
          %p170 = pneg %p43
        $region30: #{tpu_custom_call.1} parent=27 // pred_check_branch
          %172 = sbr.rel (%p170) target = $region32
        $region31: #{tpu_custom_call.1} parent=27 // pred_region
          %174 = dma.done %s166, 1024
        $region32: #{tpu_custom_call.1} parent=27 // pred_fallthru
          _
        %s175 = sand.u32 %s56, 1
        %s176 = scalar_lea.sflag [#allocation6], %s175
        %s177 = sand.u32 %s56, 1
        %s178 = smul.addr %s177, 64
        %s179 = scalar_lea.vmem [#allocation5], %s178
        // Predicated region
        $region33: #{tpu_custom_call.1} parent=27 // pred_check
          %p180 = pneg %p69
        $region34: #{tpu_custom_call.1} parent=27 // pred_check_branch
          %182 = sbr.rel (%p180) target = $region36
        $region35: #{tpu_custom_call.1} parent=27 // pred_region
          %184 = dma.done %s176, 1024
        $region36: #{tpu_custom_call.1} parent=27 // pred_fallthru
          _
        %s185 = sand.u32 %s30, 1
        %s186 = scalar_lea.sflag [#allocation3], %s185
        %s187 = sand.u32 %s30, 1
        %s188 = smul.addr %s187, 64
        %s189 = scalar_lea.vmem [#allocation2], %s188
        %p190 = pneg %p43
        %p191 = pneg %p40
        %s192 = sand.u32 %s56, 1
        %s193 = scalar_lea.sflag [#allocation6], %s192
        %s194 = sand.u32 %s56, 1
        %s195 = smul.addr %s194, 64
        %s196 = scalar_lea.vmem [#allocation5], %s195
        %p197 = pneg %p69
        %p198 = pneg %p66
        %p199 = pneg %p95
        %p200 = pneg %p92
        %s201 = sand.u32 %s82, 1
        %s202 = scalar_lea.sflag [#allocation4], %s201
        %s203 = sand.u32 %s82, 1
        %s204 = smul.addr %s203, 16
        %s205 = scalar_lea.vmem [#allocation7], %s204
        %s206 = smul.u32 8, %s22
        %s207 = smul.u32 8, %s22
        %s208 = smul.u32 2, %s22
        %v211 = vld [vmem:[%s179] sm:$0xff]
        %v212 = vld [vmem:[%s179 + $0x8] sm:$0xff]
        %v213 = vld [vmem:[%s179 + $0x10] sm:$0xff]
        %v214 = vld [vmem:[%s179 + $0x18] sm:$0xff]
        %v215 = vld [vmem:[%s179 + $0x20] sm:$0xff]
        %v216 = vld [vmem:[%s179 + $0x28] sm:$0xff]
        %v217 = vld [vmem:[%s179 + $0x30] sm:$0xff]
        %v218 = vld [vmem:[%s179 + $0x38] sm:$0xff]
        %v219 = vld [vmem:[%s169] sm:$0xff]
        %v220 = vld [vmem:[%s169 + $0x8] sm:$0xff]
        %v221 = vld [vmem:[%s169 + $0x10] sm:$0xff]
        %v222 = vld [vmem:[%s169 + $0x18] sm:$0xff]
        %v223 = vld [vmem:[%s169 + $0x20] sm:$0xff]
        %v224 = vld [vmem:[%s169 + $0x28] sm:$0xff]
        %v225 = vld [vmem:[%s169 + $0x30] sm:$0xff]
        %v226 = vld [vmem:[%s169 + $0x38] sm:$0xff]
        %v227 = vlaneseq
        %v228 = vshrl.u32 %v227, 7
        %v229 = vadd.s32 %v228, 8
        %v230 = vadd.s32 %v228, 16
        %v231 = vadd.s32 %v228, 24
        %v232 = vadd.s32 %v228, 32
        %v233 = vadd.s32 %v228, 40
        %v234 = vadd.s32 %v228, 48
        %v235 = vadd.s32 %v228, 56
        %vm236 = vcmp.lt.s32.totalorder %v228, 0
        %v237 = vsub.s32 0, %v228
        %v238 = vsel %vm236, %v237, %v228
        %v239 = vshrl.u32 %v238, 4
        %v240 = vand.u32 %v238, 15
        %v241 = vsub.s32 0, %v240
        %v242 = vsel %vm236, %v241, %v240
        %vm243 = vcmp.lt.s32.totalorder %v229, 0
        %v244 = vsub.s32 0, %v229
        %v245 = vsel %vm243, %v244, %v229
        %v246 = vshrl.u32 %v245, 4
        %v247 = vand.u32 %v245, 15
        %v248 = vsub.s32 0, %v247
        %v249 = vsel %vm243, %v248, %v247
        %vm250 = vcmp.lt.s32.totalorder %v230, 0
        %v251 = vsub.s32 0, %v230
        %v252 = vsel %vm250, %v251, %v230
        %v253 = vshrl.u32 %v252, 4
        %v254 = vand.u32 %v252, 15
        %v255 = vsub.s32 0, %v254
        %v256 = vsel %vm250, %v255, %v254
        %vm257 = vcmp.lt.s32.totalorder %v231, 0
        %v258 = vsub.s32 0, %v231
        %v259 = vsel %vm257, %v258, %v231
        %v260 = vshrl.u32 %v259, 4
        %v261 = vand.u32 %v259, 15
        %v262 = vsub.s32 0, %v261
        %v263 = vsel %vm257, %v262, %v261
        %vm264 = vcmp.lt.s32.totalorder %v232, 0
        %v265 = vsub.s32 0, %v232
        %v266 = vsel %vm264, %v265, %v232
        %v267 = vshrl.u32 %v266, 4
        %v268 = vand.u32 %v266, 15
        %v269 = vsub.s32 0, %v268
        %v270 = vsel %vm264, %v269, %v268
        %vm271 = vcmp.lt.s32.totalorder %v233, 0
        %v272 = vsub.s32 0, %v233
        %v273 = vsel %vm271, %v272, %v233
        %v274 = vshrl.u32 %v273, 4
        %v275 = vand.u32 %v273, 15
        %v276 = vsub.s32 0, %v275
        %v277 = vsel %vm271, %v276, %v275
        %vm278 = vcmp.lt.s32.totalorder %v234, 0
        %v279 = vsub.s32 0, %v234
        %v280 = vsel %vm278, %v279, %v234
        %v281 = vshrl.u32 %v280, 4
        %v282 = vand.u32 %v280, 15
        %v283 = vsub.s32 0, %v282
        %v284 = vsel %vm278, %v283, %v282
        %vm285 = vcmp.lt.s32.totalorder %v235, 0
        %v286 = vsub.s32 0, %v235
        %v287 = vsel %vm285, %v286, %v235
        %v288 = vshrl.u32 %v287, 4
        %v289 = vand.u32 %v287, 15
        %v290 = vsub.s32 0, %v289
        %v291 = vsel %vm285, %v290, %v289
        %vm292 = vcmp.ne.s32.totalorder %v242, 0
        %vm293 = vcmp.ne.s32.totalorder %v249, 0
        %vm294 = vcmp.ne.s32.totalorder %v256, 0
        %vm295 = vcmp.ne.s32.totalorder %v263, 0
        %vm296 = vcmp.ne.s32.totalorder %v270, 0
        %vm297 = vcmp.ne.s32.totalorder %v277, 0
        %vm298 = vcmp.ne.s32.totalorder %v284, 0
        %vm299 = vcmp.ne.s32.totalorder %v291, 0
        %vm300 = vcmp.lt.s32.totalorder %v242, 0
        %vm301 = vcmp.lt.s32.totalorder %v249, 0
        %vm302 = vcmp.lt.s32.totalorder %v256, 0
        %vm303 = vcmp.lt.s32.totalorder %v263, 0
        %vm304 = vcmp.lt.s32.totalorder %v270, 0
        %vm305 = vcmp.lt.s32.totalorder %v277, 0
        %vm306 = vcmp.lt.s32.totalorder %v284, 0
        %vm307 = vcmp.lt.s32.totalorder %v291, 0
        %vm308 = vmand %vm300, %vm292
        %vm309 = vmand %vm301, %vm293
        %vm310 = vmand %vm302, %vm294
        %vm311 = vmand %vm303, %vm295
        %vm312 = vmand %vm304, %vm296
        %vm313 = vmand %vm305, %vm297
        %vm314 = vmand %vm306, %vm298
        %vm315 = vmand %vm307, %vm299
        %v316 = vadd.s32 %v242, 16
        %v317 = vadd.s32 %v249, 16
        %v318 = vadd.s32 %v256, 16
        %v319 = vadd.s32 %v263, 16
        %v320 = vadd.s32 %v270, 16
        %v321 = vadd.s32 %v277, 16
        %v322 = vadd.s32 %v284, 16
        %v323 = vadd.s32 %v291, 16
        %v324 = vsel %vm308, %v316, %v242
        %v325 = vsel %vm309, %v317, %v249
        %v326 = vsel %vm310, %v318, %v256
        %v327 = vsel %vm311, %v319, %v263
        %v328 = vsel %vm312, %v320, %v270
        %v329 = vsel %vm313, %v321, %v277
        %v330 = vsel %vm314, %v322, %v284
        %v331 = vsel %vm315, %v323, %v291
        %vm332 = vcmp.eq.s32.totalorder %v324, 0
        %vm333 = vcmp.eq.s32.totalorder %v325, 0
        %vm334 = vcmp.eq.s32.totalorder %v326, 0
        %vm335 = vcmp.eq.s32.totalorder %v327, 0
        %vm336 = vcmp.eq.s32.totalorder %v328, 0
        %vm337 = vcmp.eq.s32.totalorder %v329, 0
        %vm338 = vcmp.eq.s32.totalorder %v330, 0
        %vm339 = vcmp.eq.s32.totalorder %v331, 0
        %v340 = vrot.slane %v211, 7
        %v341 = vrot.slane %v212, 7
        %v342 = vrot.slane %v213, 7
        %v343 = vrot.slane %v214, 7
        %v344 = vrot.slane %v215, 7
        %v345 = vrot.slane %v216, 7
        %v346 = vrot.slane %v217, 7
        %v347 = vrot.slane %v218, 7
        %vm348 = vcmp.lt.s32.totalorder %v228, 1
        %v349 = vsel %vm348, %v346, %v347
        %v350 = vsel %vm348, %v345, %v346
        %v351 = vsel %vm348, %v344, %v345
        %v352 = vsel %vm348, %v343, %v344
        %v353 = vsel %vm348, %v342, %v343
        %v354 = vsel %vm348, %v341, %v342
        %v355 = vsel %vm348, %v340, %v341
        %v356 = vsel %vm348, %v347, %v340
        %v357 = vsel %vm332, 1, 0
        %v358 = vsel %vm333, 1, 0
        %v359 = vsel %vm334, 1, 0
        %v360 = vsel %vm335, 1, 0
        %v361 = vsel %vm336, 1, 0
        %v362 = vsel %vm337, 1, 0
        %v363 = vsel %vm338, 1, 0
        %v364 = vsel %vm339, 1, 0
        %vm365 = vcmp.eq.s32.totalorder %v357, 1
        %vm366 = vcmp.eq.s32.totalorder %v358, 1
        %vm367 = vcmp.eq.s32.totalorder %v359, 1
        %vm368 = vcmp.eq.s32.totalorder %v360, 1
        %vm369 = vcmp.eq.s32.totalorder %v361, 1
        %vm370 = vcmp.eq.s32.totalorder %v362, 1
        %vm371 = vcmp.eq.s32.totalorder %v363, 1
        %vm372 = vcmp.eq.s32.totalorder %v364, 1
        %v373 = vsel %vm365, -inf, %v356
        %v374 = vsel %vm366, -inf, %v355
        %v375 = vsel %vm367, -inf, %v354
        %v376 = vsel %vm368, -inf, %v353
        %v377 = vsel %vm369, -inf, %v352
        %v378 = vsel %vm370, -inf, %v351
        %v379 = vsel %vm371, -inf, %v350
        %v380 = vsel %vm372, -inf, %v349
        %vm381 = vcmp.eq.s32.totalorder %v324, 15
        %vm382 = vcmp.eq.s32.totalorder %v325, 15
        %vm383 = vcmp.eq.s32.totalorder %v326, 15
        %vm384 = vcmp.eq.s32.totalorder %v327, 15
        %vm385 = vcmp.eq.s32.totalorder %v328, 15
        %vm386 = vcmp.eq.s32.totalorder %v329, 15
        %vm387 = vcmp.eq.s32.totalorder %v330, 15
        %vm388 = vcmp.eq.s32.totalorder %v331, 15
        %v389 = vrot.slane %v211, 1
        %v390 = vrot.slane %v212, 1
        %v391 = vrot.slane %v213, 1
        %v392 = vrot.slane %v214, 1
        %v393 = vrot.slane %v215, 1
        %v394 = vrot.slane %v216, 1
        %v395 = vrot.slane %v217, 1
        %v396 = vrot.slane %v218, 1
        %vm397 = vcmp.lt.s32.totalorder %v228, 7
        %v398 = vsel %vm397, %v395, %v396
        %v399 = vsel %vm397, %v394, %v395
        %v400 = vsel %vm397, %v393, %v394
        %v401 = vsel %vm397, %v392, %v393
        %v402 = vsel %vm397, %v391, %v392
        %v403 = vsel %vm397, %v390, %v391
        %v404 = vsel %vm397, %v389, %v390
        %v405 = vsel %vm397, %v396, %v389
        %v406 = vsel %vm381, 1, 0
        %v407 = vsel %vm382, 1, 0
        %v408 = vsel %vm383, 1, 0
        %v409 = vsel %vm384, 1, 0
        %v410 = vsel %vm385, 1, 0
        %v411 = vsel %vm386, 1, 0
        %v412 = vsel %vm387, 1, 0
        %v413 = vsel %vm388, 1, 0
        %vm414 = vcmp.eq.s32.totalorder %v406, 1
        %vm415 = vcmp.eq.s32.totalorder %v407, 1
        %vm416 = vcmp.eq.s32.totalorder %v408, 1
        %vm417 = vcmp.eq.s32.totalorder %v409, 1
        %vm418 = vcmp.eq.s32.totalorder %v410, 1
        %vm419 = vcmp.eq.s32.totalorder %v411, 1
        %vm420 = vcmp.eq.s32.totalorder %v412, 1
        %vm421 = vcmp.eq.s32.totalorder %v413, 1
        %v422 = vsel %vm414, -inf, %v404
        %v423 = vsel %vm415, -inf, %v403
        %v424 = vsel %vm416, -inf, %v402
        %v425 = vsel %vm417, -inf, %v401
        %v426 = vsel %vm418, -inf, %v400
        %v427 = vsel %vm419, -inf, %v399
        %v428 = vsel %vm420, -inf, %v398
        %v429 = vsel %vm421, -inf, %v405
        %v430 = vmax.f32 %v422, %v373
        %v431 = vmax.f32 %v423, %v374
        %v432 = vmax.f32 %v424, %v375
        %v433 = vmax.f32 %v425, %v376
        %v434 = vmax.f32 %v426, %v377
        %v435 = vmax.f32 %v427, %v378
        %v436 = vmax.f32 %v428, %v379
        %v437 = vmax.f32 %v429, %v380
        %v438 = vmax.f32 %v211, %v430
        %v439 = vmax.f32 %v212, %v431
        %v440 = vmax.f32 %v213, %v432
        %v441 = vmax.f32 %v214, %v433
        %v442 = vmax.f32 %v215, %v434
        %v443 = vmax.f32 %v216, %v435
        %v444 = vmax.f32 %v217, %v436
        %v445 = vmax.f32 %v218, %v437
        %v446 = vlaneseq
        %v447 = vand.u32 %v446, 127
        %vm448 = vcmp.eq.s32.totalorder %v447, 0
        %449 = vrot.lane.b32.xlu0 %v438, 1
        %v450 = vpop.permute.xlu0 %449
        %451 = vrot.lane.b32.xlu0 %v439, 1
        %v452 = vpop.permute.xlu0 %451
        %453 = vrot.lane.b32.xlu0 %v440, 1
        %v454 = vpop.permute.xlu0 %453
        %455 = vrot.lane.b32.xlu0 %v441, 1
        %v456 = vpop.permute.xlu0 %455
        %457 = vrot.lane.b32.xlu0 %v442, 1
        %v458 = vpop.permute.xlu0 %457
        %459 = vrot.lane.b32.xlu0 %v443, 1
        %v460 = vpop.permute.xlu0 %459
        %461 = vrot.lane.b32.xlu0 %v444, 1
        %v462 = vpop.permute.xlu0 %461
        %463 = vrot.lane.b32.xlu0 %v445, 1
        %v464 = vpop.permute.xlu0 %463
        %v465 = vsel %vm448, 1, 0
        %vm466 = vcmp.eq.s32.totalorder %v465, 1
        %v467 = vsel %vm466, -inf, %v450
        %v468 = vsel %vm466, -inf, %v452
        %v469 = vsel %vm466, -inf, %v454
        %v470 = vsel %vm466, -inf, %v456
        %v471 = vsel %vm466, -inf, %v458
        %v472 = vsel %vm466, -inf, %v460
        %v473 = vsel %vm466, -inf, %v462
        %v474 = vsel %vm466, -inf, %v464
        %vm475 = vcmp.eq.s32.totalorder %v447, 127
        %476 = vrot.lane.b32.xlu0 %v438, 127
        %v477 = vpop.permute.xlu0 %476
        %478 = vrot.lane.b32.xlu0 %v439, 127
        %v479 = vpop.permute.xlu0 %478
        %480 = vrot.lane.b32.xlu0 %v440, 127
        %v481 = vpop.permute.xlu0 %480
        %482 = vrot.lane.b32.xlu0 %v441, 127
        %v483 = vpop.permute.xlu0 %482
        %484 = vrot.lane.b32.xlu0 %v442, 127
        %v485 = vpop.permute.xlu0 %484
        %486 = vrot.lane.b32.xlu0 %v443, 127
        %v487 = vpop.permute.xlu0 %486
        %488 = vrot.lane.b32.xlu0 %v444, 127
        %v489 = vpop.permute.xlu0 %488
        %490 = vrot.lane.b32.xlu0 %v445, 127
        %v491 = vpop.permute.xlu0 %490
        %v492 = vsel %vm475, 1, 0
        %vm493 = vcmp.eq.s32.totalorder %v492, 1
        %v494 = vsel %vm493, -inf, %v477
        %v495 = vsel %vm493, -inf, %v479
        %v496 = vsel %vm493, -inf, %v481
        %v497 = vsel %vm493, -inf, %v483
        %v498 = vsel %vm493, -inf, %v485
        %v499 = vsel %vm493, -inf, %v487
        %v500 = vsel %vm493, -inf, %v489
        %v501 = vsel %vm493, -inf, %v491
        %v502 = vmax.f32 %v467, %v494
        %v503 = vmax.f32 %v468, %v495
        %v504 = vmax.f32 %v469, %v496
        %v505 = vmax.f32 %v470, %v497
        %v506 = vmax.f32 %v471, %v498
        %v507 = vmax.f32 %v472, %v499
        %v508 = vmax.f32 %v473, %v500
        %v509 = vmax.f32 %v474, %v501
        %v510 = vmax.f32 %v438, %v502
        %v511 = vmax.f32 %v439, %v503
        %v512 = vmax.f32 %v440, %v504
        %v513 = vmax.f32 %v441, %v505
        %v514 = vmax.f32 %v442, %v506
        %v515 = vmax.f32 %v443, %v507
        %v516 = vmax.f32 %v444, %v508
        %v517 = vmax.f32 %v445, %v509
        %vm518 = vcmp.eq.f32.partialorder %v211, %v510
        %vm519 = vcmp.eq.f32.partialorder %v212, %v511
        %vm520 = vcmp.eq.f32.partialorder %v213, %v512
        %vm521 = vcmp.eq.f32.partialorder %v214, %v513
        %vm522 = vcmp.eq.f32.partialorder %v215, %v514
        %vm523 = vcmp.eq.f32.partialorder %v216, %v515
        %vm524 = vcmp.eq.f32.partialorder %v217, %v516
        %vm525 = vcmp.eq.f32.partialorder %v218, %v517
        %vm526 = vcmp.ge.f32.partialorder %v211, 0.7
        %vm527 = vcmp.ge.f32.partialorder %v212, 0.7
        %vm528 = vcmp.ge.f32.partialorder %v213, 0.7
        %vm529 = vcmp.ge.f32.partialorder %v214, 0.7
        %vm530 = vcmp.ge.f32.partialorder %v215, 0.7
        %vm531 = vcmp.ge.f32.partialorder %v216, 0.7
        %vm532 = vcmp.ge.f32.partialorder %v217, 0.7
        %vm533 = vcmp.ge.f32.partialorder %v218, 0.7
        %vm534 = vmand %vm518, %vm526
        %vm535 = vmand %vm519, %vm527
        %vm536 = vmand %vm520, %vm528
        %vm537 = vmand %vm521, %vm529
        %vm538 = vmand %vm522, %vm530
        %vm539 = vmand %vm523, %vm531
        %vm540 = vmand %vm524, %vm532
        %vm541 = vmand %vm525, %vm533
        %vm542 = vcmp.ge.f32.partialorder %v219, 0.7
        %vm543 = vcmp.ge.f32.partialorder %v220, 0.7
        %vm544 = vcmp.ge.f32.partialorder %v221, 0.7
        %vm545 = vcmp.ge.f32.partialorder %v222, 0.7
        %vm546 = vcmp.ge.f32.partialorder %v223, 0.7
        %vm547 = vcmp.ge.f32.partialorder %v224, 0.7
        %vm548 = vcmp.ge.f32.partialorder %v225, 0.7
        %vm549 = vcmp.ge.f32.partialorder %v226, 0.7
        %vm550 = vmand %vm534, %vm542
        %vm551 = vmand %vm535, %vm543
        %vm552 = vmand %vm536, %vm544
        %vm553 = vmand %vm537, %vm545
        %vm554 = vmand %vm538, %vm546
        %vm555 = vmand %vm539, %vm547
        %vm556 = vmand %vm540, %vm548
        %vm557 = vmand %vm541, %vm549
        %vm558 = vmpackc.low %vm551, %vm550
        %vm559 = vmpackc.low %vm553, %vm552
        %v560 = vsel %vm558, 16711935, 0
        %v561 = vsel %vm559, 16711935, 0
        %v562 = vpack.c.b8 %v561, %v560
        %vm563 = vnez %v562
        %vm564 = vmpackc.low %vm555, %vm554
        %vm565 = vmpackc.low %vm557, %vm556
        %v566 = vsel %vm564, 16711935, 0
        %v567 = vsel %vm565, 16711935, 0
        %v568 = vpack.c.b8 %v567, %v566
        %vm569 = vnez %v568
        %v570 = vsel %vm563, 16843009, 0
        %v571 = vsel %vm569, 16843009, 0
        %572 = vst [vmem:[%s205] sm:$0xff] %v570
        %573 = vst [vmem:[%s205 + $0x8] sm:$0xff] %v571
        %s574 = sand.u32 %s82, 1
        %s575 = scalar_lea.sflag [#allocation4], %s574
        %s576 = sand.u32 %s82, 1
        %s577 = smul.addr %s576, 16
        %s578 = scalar_lea.vmem [#allocation7], %s577
        // Predicated region
        $region37: #{tpu_custom_call.1} parent=27 // pred_check
          %p579 = pneg %p92
        $region38: #{tpu_custom_call.1} parent=27 // pred_check_branch
          %581 = sbr.rel (%p579) target = $region40
        $region39: #{tpu_custom_call.1} parent=27 // pred_region
          %s582 = smul.u32 2, %s22
          %584 = vsyncadd %s575, 0
          %s585 = smul.addr %s582, 8
          %s586 = scalar_lea.hbm %s2, %s585
          %s587 = sshll.u32 %s578, 4
          %s588 = int_to_ptr.vmem [resolvable:$true] %s587
          %s589 = sshll.u32 %s586, 4
          %s590 = int_to_ptr.hbm [resolvable:$true] %s589
          %595 = dma.vmem_to_hbm [thread:$0]  %s588, 256, %s590, %s575, 128, 128, 8
        $region40: #{tpu_custom_call.1} parent=27 // pred_fallthru
          _
      $region28: #{tpu_custom_call.1} parent=5 // pred_fallthru
        _
      %p596 = scmp.le.s32.totalorder 2, %s17
      // Predicated region
      $region41: #{tpu_custom_call.1} parent=5 // pred_check
        %p597 = pneg %p596
      $region42: #{tpu_custom_call.1} parent=5 // pred_check_branch
        %599 = sbr.rel (%p597) target = $region44
      $region43: #{tpu_custom_call.1} parent=5 // pred_region
        %s600 = ssub.s32 %s17, 2
        // Predicated region
        $region45: #{tpu_custom_call.1} parent=43 // pred_check
          %p601 = pneg %p98
        $region46: #{tpu_custom_call.1} parent=43 // pred_check_branch
          %603 = sbr.rel (%p601) target = $region48
        $region47: #{tpu_custom_call.1} parent=43 // pred_region
          %s604 = sand.u32 %s83, 1
          %s605 = scalar_lea.sflag [#allocation4], %s604
          %s606 = sand.u32 %s83, 1
          %s607 = smul.addr %s606, 16
          %s608 = scalar_lea.vmem [#allocation7], %s607
          %610 = dma.done %s605, 256
        $region48: #{tpu_custom_call.1} parent=43 // pred_fallthru
          _
      $region44: #{tpu_custom_call.1} parent=5 // pred_fallthru
        _
    $region6: #{tpu_custom_call.1} parent=1 // loop_footer
      %s21 = sadd.s32 1, %s17
    $region7: #{tpu_custom_call.1} parent=1 // loop_footer_branch
      %16 = sbr.rel target = $region3
    $region8: #{tpu_custom_call.1} parent=1 // loop_exit
      _
    %611 = vsyncpa [#allocation3], 1
    %s612 = scalar_lea.sflag [#allocation3], 1
    %613 = vsyncpa %s612, 1
    %614 = vsyncpa [#allocation6], 1
    %s615 = scalar_lea.sflag [#allocation6], 1
    %616 = vsyncpa %s615, 1
    %617 = vsyncpa [#allocation4], 1
    %s618 = scalar_lea.sflag [#allocation4], 1
    %619 = vsyncpa %s618, 1

</llo_original>
